<compile_context>
chip_gen: v7x
topology: tpu7x:2x2x1
jax: 0.10.0
libtpu: 0.0.40
codegen_flags: <defaults>
</compile_context>

<pallas_src>
import functools

import jax
import jax.numpy as jnp
from jax.experimental import pallas as pl
from jax.experimental.pallas import tpu as pltpu

LANE = 128
HIDDEN = 128
SUBLANE_BF16 = 16  # bf16 packs two rows per sublane -> native (16, 128) tile


def _round_up(v, m):
    return ((v + m - 1) // m) * m


def dqn_kernel(x_ref, w1_ref, b1_ref, w2_ref, b2_ref, w3_ref, b3_ref, o_ref):
    # fc1 + relu  (bf16 MXU inputs, f32 accumulation, f32 bias/relu)
    h = jnp.dot(x_ref[...], w1_ref[...], preferred_element_type=jnp.float32)
    h = jnp.maximum(h + b1_ref[...], 0.0)
    # fc2 + relu
    h = jnp.dot(h.astype(jnp.bfloat16), w2_ref[...],
                preferred_element_type=jnp.float32)
    h = jnp.maximum(h + b2_ref[...], 0.0)
    # fc3 (no activation); lane-dense (128-wide padded) bf16 output store.
    o = jnp.dot(h.astype(jnp.bfloat16), w3_ref[...],
                preferred_element_type=jnp.float32)
    o_ref[...] = (o + b3_ref[...]).astype(o_ref.dtype)


def dqn_forward(x, params, *, tb=1024):
    """y = fc3(relu(fc2(relu(fc1(x))))).  x: [B, in_dim] f32 -> [B, out_dim] f32."""
    w1, b1, w2, b2, w3, b3 = params
    B, in_dim = x.shape
    hidden = w1.shape[1]
    out_dim = w3.shape[1]

    # --- Pad output feature dim to a full 128-lane width (unmasked vst). ---
    out_pad = _round_up(max(out_dim, LANE), LANE)
    if out_dim != out_pad:
        w3p = jnp.zeros((hidden, out_pad), w3.dtype).at[:, :out_dim].set(w3)
        b3p = jnp.zeros((1, out_pad), b3.dtype).at[:, :out_dim].set(b3)
    else:
        w3p, b3p = w3, b3

    # --- Batch tile: multiple of 16 (bf16 pack); prefer >= 2 grid steps so the
    #     "parallel" batch axis can be sharded across both v7x TensorCores. ---
    b_min = _round_up(max(B, SUBLANE_BF16), SUBLANE_BF16)
    tb = _round_up(max(SUBLANE_BF16, min(tb, b_min)), SUBLANE_BF16)
    if b_min >= 2 * SUBLANE_BF16 and pl.cdiv(b_min, tb) < 2:
        tb = _round_up(pl.cdiv(b_min, 2), SUBLANE_BF16)
    num_tiles = pl.cdiv(b_min, tb)
    b_pad = num_tiles * tb

    # --- x: bf16 (half the streamed read bytes), zero-padded to tiled batch. ---
    x_bf16 = x.astype(jnp.bfloat16)
    if b_pad != B:
        x_p = jnp.zeros((b_pad, in_dim), jnp.bfloat16).at[:B].set(x_bf16)
    else:
        x_p = x_bf16

    def const_spec(shape):
        nd = len(shape)
        return pl.BlockSpec(shape, lambda i, _nd=nd: (0,) * _nd)

    flops = 2 * b_pad * (in_dim * hidden + hidden * hidden + hidden * out_pad)
    bytes_accessed = (
        x_p.size * 2                              # bf16 activations in
        + (w1.size + w2.size + w3p.size) * 2      # bf16 weights (read once)
        + (b1.size + b2.size + b3p.size) * 4      # f32 biases
        + b_pad * out_pad * 2                     # bf16 output writeback
    )

    # Explicit scoped-VMEM budget (v5e default is only 16 MiB): double-buffered
    # x/out tiles + resident weights/biases + f32 intermediates, 2x headroom.
    vmem_est = (
        2 * tb * in_dim * 2                                        # x tile (bf16, 2 bufs)
        + 2 * tb * out_pad * 2                                     # out tile (bf16, 2 bufs)
        + 2 * 2 * (in_dim * hidden + hidden * hidden + hidden * out_pad)  # weights bf16
        + 2 * 4 * (2 * hidden + out_pad)                           # biases f32
        + 3 * tb * hidden * 4                                      # f32 intermediates
    )
    vmem_limit = int(min(max(2 * vmem_est, 16 * 1024 * 1024), 48 * 1024 * 1024))

    out = pl.pallas_call(
        dqn_kernel,
        out_shape=jax.ShapeDtypeStruct((b_pad, out_pad), jnp.bfloat16),
        grid_spec=pltpu.PrefetchScalarGridSpec(
            num_scalar_prefetch=0,
            grid=(num_tiles,),
            in_specs=[
                pl.BlockSpec((tb, in_dim), lambda i: (i, 0)),   # x: streamed per tile
                const_spec(w1.shape), const_spec(b1.shape),     # weights: VMEM-resident
                const_spec(w2.shape), const_spec(b2.shape),
                const_spec(w3p.shape), const_spec(b3p.shape),
            ],
            out_specs=pl.BlockSpec((tb, out_pad), lambda i: (i, 0)),
        ),
        compiler_params=pltpu.CompilerParams(
            dimension_semantics=("parallel",),
            vmem_limit_bytes=vmem_limit),
        cost_estimate=pl.CostEstimate(
            flops=flops, transcendentals=0, bytes_accessed=bytes_accessed),
    )(x_p, w1, b1, w2, b2, w3p, b3p)

    return out[:B, :out_dim].astype(jnp.float32)


def init_params(key, input_dim, output_dim, hidden=HIDDEN):
    """PyTorch nn.Linear-style init (U[-1/sqrt(fan_in), 1/sqrt(fan_in)]);
    weights stored [in, out] in bf16, biases [1, out] in f32."""
    keys = jax.random.split(key, 6)

    def linear(kw, kb, fan_in, fan_out):
        bound = 1.0 / jnp.sqrt(fan_in)
        w = jax.random.uniform(kw, (fan_in, fan_out), jnp.float32, -bound, bound)
        b = jax.random.uniform(kb, (1, fan_out), jnp.float32, -bound, bound)
        return w.astype(jnp.bfloat16), b

    w1, b1 = linear(keys[0], keys[1], input_dim, hidden)
    w2, b2 = linear(keys[2], keys[3], hidden, hidden)
    w3, b3 = linear(keys[4], keys[5], hidden, output_dim)
    return (w1, b1, w2, b2, w3, b3)


def dqn_reference(x, params):
    """Pure-JAX reference on the same bf16-weight / f32-accumulate path."""
    w1, b1, w2, b2, w3, b3 = params
    dot = functools.partial(jnp.dot, preferred_element_type=jnp.float32)
    h = jnp.maximum(dot(x.astype(jnp.bfloat16), w1) + b1, 0.0)
    h = jnp.maximum(dot(h.astype(jnp.bfloat16), w2) + b2, 0.0)
    return dot(h.astype(jnp.bfloat16), w3) + b3


def dqn_reference_f32(x, params):
    """Full-f32 reference (numerics of the original PyTorch DQN)."""
    w1, b1, w2, b2, w3, b3 = params
    h = jnp.maximum(x @ w1.astype(jnp.float32) + b1, 0.0)
    h = jnp.maximum(h @ w2.astype(jnp.float32) + b2, 0.0)
    return h @ w3.astype(jnp.float32) + b3


if __name__ == "__main__":
    key = jax.random.PRNGKey(0)
    k_param, k_x = jax.random.split(key)

    # Small shapes: batch not a tile multiple (exercises batch padding and the
    # >=2-tile split for v7x), out_dim=4 (exercises lane padding).
    batch, input_dim, output_dim = 200, 16, 4
    params = init_params(k_param, input_dim, output_dim)
    x = jax.random.normal(k_x, (batch, input_dim), jnp.float32)

    out = jax.block_until_ready(dqn_forward(x, params))
    assert out.shape == (batch, output_dim)
    assert out.dtype == jnp.float32

    ref_bf16 = dqn_reference(x, params)
    ref_f32 = dqn_reference_f32(x, params)
    assert jnp.allclose(out, ref_bf16, atol=2e-2, rtol=2e-2), float(
        jnp.max(jnp.abs(out - ref_bf16)))
    # Explicit tolerance vs the full-f32 PyTorch-equivalent reference.
    assert jnp.allclose(out, ref_f32, atol=5e-2, rtol=5e-2), float(
        jnp.max(jnp.abs(out - ref_f32)))

    # Second shape: exact multi-tile path (4 tiles of 64 rows).
    x2 = jax.random.normal(jax.random.PRNGKey(1), (256, input_dim), jnp.float32)
    out2 = jax.block_until_ready(dqn_forward(x2, params, tb=64))
    ref2 = dqn_reference(x2, params)
    assert out2.shape == (256, output_dim)
    assert jnp.allclose(out2, ref2, atol=2e-2, rtol=2e-2), float(
        jnp.max(jnp.abs(out2 - ref2)))

    print("KERNEL_OK")
</pallas_src>

<mosaic_0001>
module attributes {stable_mosaic.version = 11 : i64} {
  func.func @dqn_kernel(%arg0: i32, %arg1: memref<112x16xbf16, #tpu.memory_space<vmem>>, %arg2: memref<16x128xbf16, #tpu.memory_space<vmem>>, %arg3: memref<1x128xf32, #tpu.memory_space<vmem>>, %arg4: memref<128x128xbf16, #tpu.memory_space<vmem>>, %arg5: memref<1x128xf32, #tpu.memory_space<vmem>>, %arg6: memref<128x128xbf16, #tpu.memory_space<vmem>>, %arg7: memref<1x128xf32, #tpu.memory_space<vmem>>, %arg8: memref<112x128xbf16, #tpu.memory_space<vmem>>) attributes {dimension_semantics = [#tpu.dimension_semantics<parallel>], iteration_bounds = array<i64: 2>, scalar_prefetch = 0 : i64, scratch_operands = 0 : i64, tpu.core_type = #tpu.core_type<tc>, window_params = [{transform_indices = @transform_0, window_bounds = array<i64: 112, 16>}, {pipeline_mode = #tpu.pipeline_mode<synchronous>, transform_indices = @transform_1, window_bounds = array<i64: 16, 128>}, {pipeline_mode = #tpu.pipeline_mode<synchronous>, transform_indices = @transform_2, window_bounds = array<i64: 1, 128>}, {pipeline_mode = #tpu.pipeline_mode<synchronous>, transform_indices = @transform_3, window_bounds = array<i64: 128, 128>}, {pipeline_mode = #tpu.pipeline_mode<synchronous>, transform_indices = @transform_4, window_bounds = array<i64: 1, 128>}, {pipeline_mode = #tpu.pipeline_mode<synchronous>, transform_indices = @transform_5, window_bounds = array<i64: 128, 128>}, {pipeline_mode = #tpu.pipeline_mode<synchronous>, transform_indices = @transform_6, window_bounds = array<i64: 1, 128>}, {transform_indices = @transform_7, window_bounds = array<i64: 112, 128>}]} {
    %c0 = arith.constant 0 : index
    %c0_0 = arith.constant 0 : index
    %0 = vector.load %arg1[%c0, %c0_0] : memref<112x16xbf16, #tpu.memory_space<vmem>>, vector<112x16xbf16>
    %c0_1 = arith.constant 0 : index
    %c0_2 = arith.constant 0 : index
    %1 = vector.load %arg2[%c0_1, %c0_2] : memref<16x128xbf16, #tpu.memory_space<vmem>>, vector<16x128xbf16>
    %cst = arith.constant dense<0.000000e+00> : vector<112x128xf32>
    %2 = tpu.matmul %0, %1, %cst {dimension_numbers = #tpu.dot_dimension_numbers<[1], [0], [0], [1], [0, 0, 1, 1], [], []>} : vector<112x16xbf16>, vector<16x128xbf16>, vector<112x128xf32> -> vector<112x128xf32>
    %c0_3 = arith.constant 0 : index
    %c0_4 = arith.constant 0 : index
    %3 = vector.load %arg3[%c0_3, %c0_4] : memref<1x128xf32, #tpu.memory_space<vmem>>, vector<1x128xf32>
    %4 = vector.broadcast %3 : vector<1x128xf32> to vector<112x128xf32>
    %5 = arith.addf %2, %4 : vector<112x128xf32>
    %cst_5 = arith.constant 0.000000e+00 : f32
    %6 = vector.broadcast %cst_5 : f32 to vector<112x128xf32>
    %7 = arith.maximumf %5, %6 : vector<112x128xf32>
    %8 = arith.truncf %7 : vector<112x128xf32> to vector<112x128xbf16>
    %c0_6 = arith.constant 0 : index
    %c0_7 = arith.constant 0 : index
    %9 = vector.load %arg4[%c0_6, %c0_7] : memref<128x128xbf16, #tpu.memory_space<vmem>>, vector<128x128xbf16>
    %cst_8 = arith.constant dense<0.000000e+00> : vector<112x128xf32>
    %10 = tpu.matmul %8, %9, %cst_8 {dimension_numbers = #tpu.dot_dimension_numbers<[1], [0], [0], [1], [0, 0, 1, 1], [], []>} : vector<112x128xbf16>, vector<128x128xbf16>, vector<112x128xf32> -> vector<112x128xf32>
    %c0_9 = arith.constant 0 : index
    %c0_10 = arith.constant 0 : index
    %11 = vector.load %arg5[%c0_9, %c0_10] : memref<1x128xf32, #tpu.memory_space<vmem>>, vector<1x128xf32>
    %12 = vector.broadcast %11 : vector<1x128xf32> to vector<112x128xf32>
    %13 = arith.addf %10, %12 : vector<112x128xf32>
    %cst_11 = arith.constant 0.000000e+00 : f32
    %14 = vector.broadcast %cst_11 : f32 to vector<112x128xf32>
    %15 = arith.maximumf %13, %14 : vector<112x128xf32>
    %16 = arith.truncf %15 : vector<112x128xf32> to vector<112x128xbf16>
    %c0_12 = arith.constant 0 : index
    %c0_13 = arith.constant 0 : index
    %17 = vector.load %arg6[%c0_12, %c0_13] : memref<128x128xbf16, #tpu.memory_space<vmem>>, vector<128x128xbf16>
    %cst_14 = arith.constant dense<0.000000e+00> : vector<112x128xf32>
    %18 = tpu.matmul %16, %17, %cst_14 {dimension_numbers = #tpu.dot_dimension_numbers<[1], [0], [0], [1], [0, 0, 1, 1], [], []>} : vector<112x128xbf16>, vector<128x128xbf16>, vector<112x128xf32> -> vector<112x128xf32>
    %c0_15 = arith.constant 0 : index
    %c0_16 = arith.constant 0 : index
    %19 = vector.load %arg7[%c0_15, %c0_16] : memref<1x128xf32, #tpu.memory_space<vmem>>, vector<1x128xf32>
    %20 = vector.broadcast %19 : vector<1x128xf32> to vector<112x128xf32>
    %21 = arith.addf %18, %20 : vector<112x128xf32>
    %22 = arith.truncf %21 : vector<112x128xf32> to vector<112x128xbf16>
    %c0_17 = arith.constant 0 : index
    %c0_18 = arith.constant 0 : index
    %23 = vector.load %arg8[%c0_17, %c0_18] : memref<112x128xbf16, #tpu.memory_space<vmem>>, vector<112x128xbf16>
    tpu.vector_store %arg8[%c0_17, %c0_18], %22 {strides = array<i32>} : memref<112x128xbf16, #tpu.memory_space<vmem>>, vector<112x128xbf16>,
    return
  }
  func.func @transform_0(%arg0: i32) -> (i32, i32) {
    %c0_i32 = arith.constant 0 : i32
    %c0_i32_0 = arith.constant 0 : i32
    return %arg0, %c0_i32 : i32, i32
  }
  func.func @transform_1(%arg0: i32) -> (i32, i32) {
    %c0_i32 = arith.constant 0 : i32
    %c0_i32_0 = arith.constant 0 : i32
    %c0_i32_1 = arith.constant 0 : i32
    return %c0_i32, %c0_i32_0 : i32, i32
  }
  func.func @transform_2(%arg0: i32) -> (i32, i32) {
    %c0_i32 = arith.constant 0 : i32
    %c0_i32_0 = arith.constant 0 : i32
    %c0_i32_1 = arith.constant 0 : i32
    return %c0_i32, %c0_i32_0 : i32, i32
  }
  func.func @transform_3(%arg0: i32) -> (i32, i32) {
    %c0_i32 = arith.constant 0 : i32
    %c0_i32_0 = arith.constant 0 : i32
    %c0_i32_1 = arith.constant 0 : i32
    return %c0_i32, %c0_i32_0 : i32, i32
  }
  func.func @transform_4(%arg0: i32) -> (i32, i32) {
    %c0_i32 = arith.constant 0 : i32
    %c0_i32_0 = arith.constant 0 : i32
    %c0_i32_1 = arith.constant 0 : i32
    return %c0_i32, %c0_i32_0 : i32, i32
  }
  func.func @transform_5(%arg0: i32) -> (i32, i32) {
    %c0_i32 = arith.constant 0 : i32
    %c0_i32_0 = arith.constant 0 : i32
    %c0_i32_1 = arith.constant 0 : i32
    return %c0_i32, %c0_i32_0 : i32, i32
  }
  func.func @transform_6(%arg0: i32) -> (i32, i32) {
    %c0_i32 = arith.constant 0 : i32
    %c0_i32_0 = arith.constant 0 : i32
    %c0_i32_1 = arith.constant 0 : i32
    return %c0_i32, %c0_i32_0 : i32, i32
  }
  func.func @transform_7(%arg0: i32) -> (i32, i32) {
    %c0_i32 = arith.constant 0 : i32
    %c0_i32_0 = arith.constant 0 : i32
    return %arg0, %c0_i32 : i32, i32
  }
}

</mosaic_0001>

<llo_original>
// kernel: tpu_custom_call.1
$region0: #{tpu_custom_call.1}
  #allocation0 [shape = 'u32[]', space=smem, size = 0x4, offset = 0x4, fixed_abs, tag = 'smem constant byte address 0x4 - core index']
  #allocation1 [shape = 'u32[144,128]{1,0:T(1,128)}', space=vmem, size = 0x12000, scoped, tag = 'internal scratch']
  %s0 = inlined_call_operand.vmem [shape: bf16[224,16], index: 0, kind: input, shape index: {}]
  %s1 = inlined_call_operand.hbm [shape: bf16[16,128], index: 1, kind: input, shape index: {}]
  %s2 = inlined_call_operand.vmem [shape: f32[1,128], index: 2, kind: input, shape index: {}]
  %s3 = inlined_call_operand.vmem [shape: bf16[128,128], index: 3, kind: input, shape index: {}]
  %s4 = inlined_call_operand.vmem [shape: f32[1,128], index: 4, kind: input, shape index: {}]
  %s5 = inlined_call_operand.vmem [shape: bf16[128,128], index: 5, kind: input, shape index: {}]
  %s6 = inlined_call_operand.vmem [shape: f32[1,128], index: 6, kind: input, shape index: {}]
  %s7 = inlined_call_operand.hbm [shape: bf16[224,128], index: 7, kind: output, shape index: {}]
  %s8 = sld [smem:[#allocation0]]
  $region65: #{tpu_custom_call.1} parent=0
    _
  %s10 = ssub.s32 1, %s8
  %s11 = scalar_select 0, %s10, %s8
  $region1: #{tpu_custom_call.1} parent=0
    #allocation2 [shape = 'u8[4096]{0}', space=vmem, size = 0x1000, scoped, tag = 'input window, operand 1, single buffered']
    #allocation3 [shape = 's32[2]{0}', space=sflag, size = 0x8, scoped, tag = 'scoped memory for tpu_custom_call.1']
    #allocation4 [shape = 's32[2]{0}', space=sflag, size = 0x8, scoped, tag = 'scoped memory for tpu_custom_call.1']
    #allocation5 [shape = 'u8[57344]{0}', space=vmem, size = 0xe000, scoped, tag = 'output window, operand 0']
    %12 = vsyncpa [#allocation3], 0
    %13 = vsyncpa [#allocation4], 0
    %s14 = scalar_lea.sflag [#allocation4], 1
    %15 = vsyncpa %s14, 0
    loop: start=0, step=1, limit=4
    $region2: #{tpu_custom_call.1} parent=1 // loop_pre_header
      _
    $region3: #{tpu_custom_call.1} parent=1 // loop_header
      %s17 = sphi 0, %s21
      %p18 = scmp.ge.s32.totalorder %s17, 4
      %s27 = sphi 0, %s29
      %s30 = sphi 0, %s27
      %s31 = sphi 0, %s30
      %s47 = sphi 0, %s31
      %s51 = sphi 0, %s51
      %s53 = sphi 0, %s51
      %s54 = sphi 0, %s53
      %s68 = sphi 0, %s54
      %s72 = sphi 0, %s72
      %s74 = sphi 0, %s72
      %s75 = sphi 0, %s74
      %s89 = sphi 0, %s75
      %s93 = sphi 0, %s93
      %s95 = sphi 0, %s93
      %s96 = sphi 0, %s95
      %s110 = sphi 0, %s96
      %s114 = sphi 0, %s114
      %s116 = sphi 0, %s114
      %s117 = sphi 0, %s116
      %s131 = sphi 0, %s117
      %s135 = sphi 0, %s135
      %s137 = sphi 0, %s135
      %s138 = sphi 0, %s137
      %s152 = sphi 0, %s138
      %s156 = sphi 0, %s156
      %s158 = sphi 0, %s156
      %s159 = sphi 0, %s158
      %s173 = sphi 0, %s159
      %s179 = sphi 0, %s181
      %s182 = sphi 0, %s179
      %s183 = sphi 0, %s182
      %s199 = sphi 0, %s183
    $region4: #{tpu_custom_call.1} parent=1 // loop_header_branch
      %20 = sbr.rel (%p18) target = $region8
    $region5: #{tpu_custom_call.1} parent=1 // loop_body
      %s22 = ssub.s32 %s17, 1
      %s23 = ssub.s32 %s17, 2
      %s24 = sadd.s32 %s17, 1
      %s25 = ssub.s32 %s17, %s24
      %p26 = scmp.eq.s32.totalorder %s25, 0
      %s28 = sadd.s32 %s27, 1
      %s29 = scalar_select %p26, %s27, %s28
      %p32 = pneg %p26
      %p33 = scmp.eq.s32.totalorder %s17, 1
      %p34 = por %p32, %p33
      %p35 = scmp.ne.s32.totalorder %s27, %s30
      %p36 = scmp.eq.s32.totalorder %s17, 0
      %p37 = por %p35, %p36
      %p38 = scmp.ne.s32.totalorder %s27, %s30
      %p39 = scmp.eq.s32.totalorder %s22, 1
      %p40 = por %p38, %p39
      %p41 = scmp.ne.s32.totalorder %s30, %s31
      %p42 = scmp.eq.s32.totalorder %s22, 0
      %p43 = por %p41, %p42
      %p44 = scmp.ne.s32.totalorder %s30, %s31
      %p45 = scmp.eq.s32.totalorder %s23, 1
      %p46 = por %p44, %p45
      %p48 = scmp.ne.s32.totalorder %s31, %s47
      %p49 = scmp.eq.s32.totalorder %s23, 0
      %p50 = por %p48, %p49
      %s52 = sadd.s32 %s51, 1
      %p55 = scmp.eq.s32.totalorder %s17, 1
      %p56 = scmp.ne.s32.totalorder %s51, %s53
      %p57 = scmp.eq.s32.totalorder %s17, 0
      %p58 = por %p56, %p57
      %p59 = scmp.ne.s32.totalorder %s51, %s53
      %p60 = scmp.eq.s32.totalorder %s22, 1
      %p61 = por %p59, %p60
      %p62 = scmp.ne.s32.totalorder %s53, %s54
      %p63 = scmp.eq.s32.totalorder %s22, 0
      %p64 = por %p62, %p63
      %p65 = scmp.ne.s32.totalorder %s53, %s54
      %p66 = scmp.eq.s32.totalorder %s23, 1
      %p67 = por %p65, %p66
      %p69 = scmp.ne.s32.totalorder %s54, %s68
      %p70 = scmp.eq.s32.totalorder %s23, 0
      %p71 = por %p69, %p70
      %s73 = sadd.s32 %s72, 1
      %p76 = scmp.eq.s32.totalorder %s17, 1
      %p77 = scmp.ne.s32.totalorder %s72, %s74
      %p78 = scmp.eq.s32.totalorder %s17, 0
      %p79 = por %p77, %p78
      %p80 = scmp.ne.s32.totalorder %s72, %s74
      %p81 = scmp.eq.s32.totalorder %s22, 1
      %p82 = por %p80, %p81
      %p83 = scmp.ne.s32.totalorder %s74, %s75
      %p84 = scmp.eq.s32.totalorder %s22, 0
      %p85 = por %p83, %p84
      %p86 = scmp.ne.s32.totalorder %s74, %s75
      %p87 = scmp.eq.s32.totalorder %s23, 1
      %p88 = por %p86, %p87
      %p90 = scmp.ne.s32.totalorder %s75, %s89
      %p91 = scmp.eq.s32.totalorder %s23, 0
      %p92 = por %p90, %p91
      %s94 = sadd.s32 %s93, 1
      %p97 = scmp.eq.s32.totalorder %s17, 1
      %p98 = scmp.ne.s32.totalorder %s93, %s95
      %p99 = scmp.eq.s32.totalorder %s17, 0
      %p100 = por %p98, %p99
      %p101 = scmp.ne.s32.totalorder %s93, %s95
      %p102 = scmp.eq.s32.totalorder %s22, 1
      %p103 = por %p101, %p102
      %p104 = scmp.ne.s32.totalorder %s95, %s96
      %p105 = scmp.eq.s32.totalorder %s22, 0
      %p106 = por %p104, %p105
      %p107 = scmp.ne.s32.totalorder %s95, %s96
      %p108 = scmp.eq.s32.totalorder %s23, 1
      %p109 = por %p107, %p108
      %p111 = scmp.ne.s32.totalorder %s96, %s110
      %p112 = scmp.eq.s32.totalorder %s23, 0
      %p113 = por %p111, %p112
      %s115 = sadd.s32 %s114, 1
      %p118 = scmp.eq.s32.totalorder %s17, 1
      %p119 = scmp.ne.s32.totalorder %s114, %s116
      %p120 = scmp.eq.s32.totalorder %s17, 0
      %p121 = por %p119, %p120
      %p122 = scmp.ne.s32.totalorder %s114, %s116
      %p123 = scmp.eq.s32.totalorder %s22, 1
      %p124 = por %p122, %p123
      %p125 = scmp.ne.s32.totalorder %s116, %s117
      %p126 = scmp.eq.s32.totalorder %s22, 0
      %p127 = por %p125, %p126
      %p128 = scmp.ne.s32.totalorder %s116, %s117
      %p129 = scmp.eq.s32.totalorder %s23, 1
      %p130 = por %p128, %p129
      %p132 = scmp.ne.s32.totalorder %s117, %s131
      %p133 = scmp.eq.s32.totalorder %s23, 0
      %p134 = por %p132, %p133
      %s136 = sadd.s32 %s135, 1
      %p139 = scmp.eq.s32.totalorder %s17, 1
      %p140 = scmp.ne.s32.totalorder %s135, %s137
      %p141 = scmp.eq.s32.totalorder %s17, 0
      %p142 = por %p140, %p141
      %p143 = scmp.ne.s32.totalorder %s135, %s137
      %p144 = scmp.eq.s32.totalorder %s22, 1
      %p145 = por %p143, %p144
      %p146 = scmp.ne.s32.totalorder %s137, %s138
      %p147 = scmp.eq.s32.totalorder %s22, 0
      %p148 = por %p146, %p147
      %p149 = scmp.ne.s32.totalorder %s137, %s138
      %p150 = scmp.eq.s32.totalorder %s23, 1
      %p151 = por %p149, %p150
      %p153 = scmp.ne.s32.totalorder %s138, %s152
      %p154 = scmp.eq.s32.totalorder %s23, 0
      %p155 = por %p153, %p154
      %s157 = sadd.s32 %s156, 1
      %p160 = scmp.eq.s32.totalorder %s17, 1
      %p161 = scmp.ne.s32.totalorder %s156, %s158
      %p162 = scmp.eq.s32.totalorder %s17, 0
      %p163 = por %p161, %p162
      %p164 = scmp.ne.s32.totalorder %s156, %s158
      %p165 = scmp.eq.s32.totalorder %s22, 1
      %p166 = por %p164, %p165
      %p167 = scmp.ne.s32.totalorder %s158, %s159
      %p168 = scmp.eq.s32.totalorder %s22, 0
      %p169 = por %p167, %p168
      %p170 = scmp.ne.s32.totalorder %s158, %s159
      %p171 = scmp.eq.s32.totalorder %s23, 1
      %p172 = por %p170, %p171
      %p174 = scmp.ne.s32.totalorder %s159, %s173
      %p175 = scmp.eq.s32.totalorder %s23, 0
      %p176 = por %p174, %p175
      %s177 = ssub.s32 %s17, %s24
      %p178 = scmp.eq.s32.totalorder %s177, 0
      %s180 = sadd.s32 %s179, 1
      %s181 = scalar_select %p178, %s179, %s180
      %p184 = pneg %p178
      %p185 = scmp.eq.s32.totalorder %s17, 1
      %p186 = por %p184, %p185
      %p187 = scmp.ne.s32.totalorder %s179, %s182
      %p188 = scmp.eq.s32.totalorder %s17, 0
      %p189 = por %p187, %p188
      %p190 = scmp.ne.s32.totalorder %s179, %s182
      %p191 = scmp.eq.s32.totalorder %s22, 1
      %p192 = por %p190, %p191
      %p193 = scmp.ne.s32.totalorder %s182, %s183
      %p194 = scmp.eq.s32.totalorder %s22, 0
      %p195 = por %p193, %p194
      %p196 = scmp.ne.s32.totalorder %s182, %s183
      %p197 = scmp.eq.s32.totalorder %s23, 1
      %p198 = por %p196, %p197
      %p200 = scmp.ne.s32.totalorder %s183, %s199
      %p201 = scmp.eq.s32.totalorder %s23, 0
      %p202 = por %p200, %p201
      %p203 = scmp.le.s32.totalorder 1, %s17
      %p204 = scmp.lt.s32.totalorder %s17, 3
      %p205 = pnand %p203, %p204
      %p206 = pneg %p205
      // Predicated region
      $region9: #{tpu_custom_call.1} parent=5 // pred_check
        _
      $region10: #{tpu_custom_call.1} parent=5 // pred_check_branch
        %208 = sbr.rel (%p205) target = $region12
      $region11: #{tpu_custom_call.1} parent=5 // pred_region
        %s209 = ssub.s32 %s17, 1
        // Predicated region
        $region13: #{tpu_custom_call.1} parent=11 // pred_check
          %p210 = pneg %p64
        $region14: #{tpu_custom_call.1} parent=11 // pred_check_branch
          %212 = sbr.rel (%p210) target = $region16
        $region15: #{tpu_custom_call.1} parent=11 // pred_region
          %s214 = ssub.s32 128, 128
          %215 = vsyncadd [#allocation3], %s214
          %s216 = sshll.u32 [#allocation2], 4
          %s217 = int_to_ptr.vmem [resolvable:$true] %s216
          %222 = dma.hbm_to_vmem [thread:$0]  %s1, 128, %s217, [#allocation3], 64, 64, 4
        $region16: #{tpu_custom_call.1} parent=11 // pred_fallthru
          _
        // Predicated region
        $region17: #{tpu_custom_call.1} parent=11 // pred_check
          %p223 = pneg %p85
        $region18: #{tpu_custom_call.1} parent=11 // pred_check_branch
          %225 = sbr.rel (%p223) target = $region20
        $region19: #{tpu_custom_call.1} parent=11 // pred_region
          _
        $region20: #{tpu_custom_call.1} parent=11 // pred_fallthru
          _
        // Predicated region
        $region21: #{tpu_custom_call.1} parent=11 // pred_check
          %p226 = pneg %p106
        $region22: #{tpu_custom_call.1} parent=11 // pred_check_branch
          %228 = sbr.rel (%p226) target = $region24
        $region23: #{tpu_custom_call.1} parent=11 // pred_region
          _
        $region24: #{tpu_custom_call.1} parent=11 // pred_fallthru
          _
        // Predicated region
        $region25: #{tpu_custom_call.1} parent=11 // pred_check
          %p229 = pneg %p127
        $region26: #{tpu_custom_call.1} parent=11 // pred_check_branch
          %231 = sbr.rel (%p229) target = $region28
        $region27: #{tpu_custom_call.1} parent=11 // pred_region
          _
        $region28: #{tpu_custom_call.1} parent=11 // pred_fallthru
          _
        // Predicated region
        $region29: #{tpu_custom_call.1} parent=11 // pred_check
          %p232 = pneg %p148
        $region30: #{tpu_custom_call.1} parent=11 // pred_check_branch
          %234 = sbr.rel (%p232) target = $region32
        $region31: #{tpu_custom_call.1} parent=11 // pred_region
          _
        $region32: #{tpu_custom_call.1} parent=11 // pred_fallthru
          _
        // Predicated region
        $region33: #{tpu_custom_call.1} parent=11 // pred_check
          %p235 = pneg %p169
        $region34: #{tpu_custom_call.1} parent=11 // pred_check_branch
          %237 = sbr.rel (%p235) target = $region36
        $region35: #{tpu_custom_call.1} parent=11 // pred_region
          _
        $region36: #{tpu_custom_call.1} parent=11 // pred_fallthru
          _
      $region12: #{tpu_custom_call.1} parent=5 // pred_fallthru
        _
      %p238 = scmp.lt.s32.totalorder %s17, 2
      // Predicated region
      $region37: #{tpu_custom_call.1} parent=5 // pred_check
        %p239 = pneg %p238
      $region38: #{tpu_custom_call.1} parent=5 // pred_check_branch
        %241 = sbr.rel (%p239) target = $region40
      $region39: #{tpu_custom_call.1} parent=5 // pred_region
        // Predicated region
        $region41: #{tpu_custom_call.1} parent=39 // pred_check
          %p242 = pneg %p37
        $region42: #{tpu_custom_call.1} parent=39 // pred_check_branch
          %244 = sbr.rel (%p242) target = $region44
        $region43: #{tpu_custom_call.1} parent=39 // pred_region
          %s245 = smul.u32 14, %s17
          %p246 = scmp.lt.s32.totalorder %s245, 27
          %s247 = scalar_select %p246, %s245, 27
          %s248 = smul.addr %s247, 4
          %s249 = scalar_lea.vmem %s0, %s248
          %s250 = smul.u32 14, %s17
        $region44: #{tpu_custom_call.1} parent=39 // pred_fallthru
          _
      $region40: #{tpu_custom_call.1} parent=5 // pred_fallthru
        _
      %p251 = scmp.le.s32.totalorder 1, %s17
      %p252 = scmp.lt.s32.totalorder %s17, 3
      %p253 = pnand %p251, %p252
      %p254 = pneg %p253
      // Predicated region
      $region45: #{tpu_custom_call.1} parent=5 // pred_check
        _
      $region46: #{tpu_custom_call.1} parent=5 // pred_check_branch
        %256 = sbr.rel (%p253) target = $region48
      $region47: #{tpu_custom_call.1} parent=5 // pred_region
        %s257 = ssub.s32 %s17, 1
        // Predicated region
        $region49: #{tpu_custom_call.1} parent=47 // pred_check
          %p258 = pneg %p64
        $region50: #{tpu_custom_call.1} parent=47 // pred_check_branch
          %260 = sbr.rel (%p258) target = $region52
        $region51: #{tpu_custom_call.1} parent=47 // pred_region
          %261 = dma.done [#allocation3], 128
        $region52: #{tpu_custom_call.1} parent=47 // pred_fallthru
          _
        %s262 = smul.u32 14, %s22
        %p263 = scmp.lt.s32.totalorder %s262, 27
        %s264 = scalar_select %p263, %s262, 27
        %s265 = smul.addr %s264, 4
        %s266 = scalar_lea.vmem %s0, %s265
        %p267 = pneg %p43
        %p268 = pneg %p40
        %p269 = pneg %p64
        %p270 = pneg %p61
        %p271 = pneg %p85
        %p272 = pneg %p82
        %p273 = pneg %p106
        %p274 = pneg %p103
        %p275 = pneg %p127
        %p276 = pneg %p124
        %p277 = pneg %p148
        %p278 = pneg %p145
        %p279 = pneg %p169
        %p280 = pneg %p166
        %p281 = pneg %p195
        %p282 = pneg %p192
        %s283 = sand.u32 %s182, 1
        %s284 = scalar_lea.sflag [#allocation4], %s283
        %s285 = sand.u32 %s182, 1
        %s286 = smul.addr %s285, 56
        %s287 = scalar_lea.vmem [#allocation5], %s286
        %s288 = smul.u32 14, %s22
        %p289 = scmp.lt.s32.totalorder %s288, 27
        %s290 = scalar_select %p289, %s288, 27
        %s291 = smul.addr %s290, 4
        %s292 = scalar_lea.vmem %s0, %s291
        %s293 = smul.u32 14, %s22
        %s294 = smul.u32 14, %s22
        %v296 = vld [vmem:[%s292] sm:$0xf]
        %v297 = vld [vmem:[%s292 + $0x4] sm:$0xf]
        %v298 = vld [vmem:[%s292 + $0x8] sm:$0xf]
        %v299 = vld [vmem:[%s292 + $0xc] sm:$0xf]
        %v300 = vld [vmem:[%s292 + $0x10] sm:$0xf]
        %v301 = vld [vmem:[%s292 + $0x14] sm:$0xf]
        %v302 = vld [vmem:[%s292 + $0x18] sm:$0xf]
        %v303 = vld [vmem:[%s292 + $0x1c] sm:$0xf]
        %v304 = vld [vmem:[%s292 + $0x20] sm:$0xf]
        %v305 = vld [vmem:[%s292 + $0x24] sm:$0xf]
        %v306 = vld [vmem:[%s292 + $0x28] sm:$0xf]
        %v307 = vld [vmem:[%s292 + $0x2c] sm:$0xf]
        %v308 = vld [vmem:[%s292 + $0x30] sm:$0xf]
        %v309 = vld [vmem:[%s292 + $0x34] sm:$0xf]
        %v310 = vld [vmem:[#allocation2] sm:$0xf]
        %v311 = vld [vmem:[#allocation2 + $0x4] sm:$0xf]
        %v312 = vld [vmem:[%s2] sm:$0x1]
        %v314 = vlaneseq
        %v315 = vshrl.u32 %v314, 7
        %v316 = vsub.s32 0, %v315
        %v317 = vrot.slane %v312, %v316
        %v333 = vunpack.c.l.b16 %v296
        %v334 = vunpack.c.l.b16 %v297
        %v335 = vunpack.c.l.b16 %v298
        %v336 = vunpack.c.l.b16 %v299
        %v337 = vunpack.c.l.b16 %v300
        %v338 = vunpack.c.l.b16 %v301
        %v339 = vunpack.c.l.b16 %v302
        %v340 = vunpack.c.l.b16 %v303
        %v341 = vunpack.c.l.b16 %v304
        %v342 = vunpack.c.l.b16 %v305
        %v343 = vunpack.c.l.b16 %v306
        %v344 = vunpack.c.l.b16 %v307
        %v345 = vunpack.c.l.b16 %v308
        %v346 = vunpack.c.l.b16 %v309
        %v347 = vpack.c.b16 %v334, %v333
        %v348 = vpack.c.b16 %v336, %v335
        %v349 = vpack.c.b16 %v338, %v337
        %v350 = vpack.c.b16 %v340, %v339
        %v351 = vpack.c.b16 %v342, %v341
        %v352 = vpack.c.b16 %v344, %v343
        %v353 = vpack.c.b16 %v346, %v345
        %v356 = vunpack.c.l.b16 %v310
        %v357 = vunpack.c.l.b16 %v311
        %v358 = vpack.c.b16 %v357, %v356
        %vm360 = vcmask 130048
        %v362 = vsel %vm360, %v347, 0
        %v365 = vsel %vm360, %v348, 0
        %v368 = vsel %vm360, %v349, 0
        %v371 = vsel %vm360, %v350, 0
        %v374 = vsel %vm360, %v351, 0
        %v377 = vsel %vm360, %v352, 0
        %v380 = vsel %vm360, %v353, 0
        %382 = vmatprep.subr.bf16.mxu0 0
        %383 = vmatpush1.bf16.msra.mxu0 %v358
        %384 = vmatprep.subr.bf16.mxu0 0
        %385 = vmatpush1.bf16.msra.mxu0 0
        %386 = vmatprep.subr.bf16.mxu0 0
        %387 = vmatpush1.bf16.msra.mxu0 0
        %388 = vmatprep.subr.bf16.mxu0 0
        %389 = vmatpush1.bf16.msra.mxu0 0
        %390 = vmatprep.subr.bf16.mxu0 0
        %391 = vmatpush1.bf16.msra.mxu0 0
        %392 = vmatprep.subr.bf16.mxu0 0
        %393 = vmatpush1.bf16.msra.mxu0 0
        %394 = vmatprep.subr.bf16.mxu0 0
        %395 = vmatpush1.bf16.msra.mxu0 0
        %396 = vmatprep.subr.bf16.mxu0 0
        %397 = vmatpush1.bf16.msra.mxu0 0
        %398 = vmatprep.subr.bf16.mxu0 0
        %399 = vmatpush1.bf16.msra.mxu0 0
        %400 = vmatprep.subr.bf16.mxu0 0
        %401 = vmatpush1.bf16.msra.mxu0 0
        %402 = vmatprep.subr.bf16.mxu0 0
        %403 = vmatpush1.bf16.msra.mxu0 0
        %404 = vmatprep.subr.bf16.mxu0 0
        %405 = vmatpush1.bf16.msra.mxu0 0
        %406 = vmatprep.subr.bf16.mxu0 0
        %407 = vmatpush1.bf16.msra.mxu0 0
        %408 = vmatprep.subr.bf16.mxu0 0
        %409 = vmatpush1.bf16.msra.mxu0 0
        %410 = vmatprep.subr.bf16.mxu0 0
        %411 = vmatpush1.bf16.msra.mxu0 0
        %412 = vmatprep.subr.bf16.mxu0 0
        %413 = vmatpush1.bf16.msra.mxu0 0
        %414 = vmatprep.mubr.bf16.mxu0 0
        %415 = vmatmul.mubr.bf16.gmra.mrb[0].mxu0 %v362
        %v416 = vpop.f32.mrb[0].mxu0
        %v417 = vadd.f32 %v317, %v416
        %v418 = vpop.f32.mrb[0].mxu0
        %v419 = vpop.f32.mrb[0].mxu0
        %v420 = vadd.f32 %v317, %v419
        %v421 = vpop.f32.mrb[0].mxu0
        %422 = vmatprep.mubr.bf16.mxu0 0
        %423 = vmatmul.mubr.bf16.gmra.mrb[0].mxu0 %v365
        %v424 = vpop.f32.mrb[0].mxu0
        %v425 = vadd.f32 %v317, %v424
        %v426 = vpop.f32.mrb[0].mxu0
        %v427 = vpop.f32.mrb[0].mxu0
        %v428 = vadd.f32 %v317, %v427
        %v429 = vpop.f32.mrb[0].mxu0
        %430 = vmatprep.mubr.bf16.mxu0 0
        %431 = vmatmul.mubr.bf16.gmra.mrb[0].mxu0 %v368
        %v432 = vpop.f32.mrb[0].mxu0
        %v433 = vadd.f32 %v317, %v432
        %v434 = vpop.f32.mrb[0].mxu0
        %v435 = vpop.f32.mrb[0].mxu0
        %v436 = vadd.f32 %v317, %v435
        %v437 = vpop.f32.mrb[0].mxu0
        %438 = vmatprep.mubr.bf16.mxu0 0
        %439 = vmatmul.mubr.bf16.gmra.mrb[0].mxu0 %v371
        %v440 = vpop.f32.mrb[0].mxu0
        %v441 = vadd.f32 %v317, %v440
        %v442 = vpop.f32.mrb[0].mxu0
        %v443 = vpop.f32.mrb[0].mxu0
        %v444 = vadd.f32 %v317, %v443
        %v445 = vpop.f32.mrb[0].mxu0
        %446 = vmatprep.mubr.bf16.mxu0 0
        %447 = vmatmul.mubr.bf16.gmra.mrb[0].mxu0 %v374
        %v448 = vpop.f32.mrb[0].mxu0
        %v449 = vadd.f32 %v317, %v448
        %v450 = vpop.f32.mrb[0].mxu0
        %v451 = vpop.f32.mrb[0].mxu0
        %v452 = vadd.f32 %v317, %v451
        %v453 = vpop.f32.mrb[0].mxu0
        %454 = vmatprep.mubr.bf16.mxu0 0
        %455 = vmatmul.mubr.bf16.gmra.mrb[0].mxu0 %v377
        %v456 = vpop.f32.mrb[0].mxu0
        %v457 = vadd.f32 %v317, %v456
        %v458 = vpop.f32.mrb[0].mxu0
        %v459 = vpop.f32.mrb[0].mxu0
        %v460 = vadd.f32 %v317, %v459
        %v461 = vpop.f32.mrb[0].mxu0
        %462 = vmatprep.mubr.bf16.mxu0 0
        %463 = vmatmul.mubr.bf16.gmra.mrb[0].mxu0 %v380
        %v464 = vpop.f32.mrb[0].mxu0
        %v465 = vadd.f32 %v317, %v464
        %v466 = vpop.f32.mrb[0].mxu0
        %v467 = vpop.f32.mrb[0].mxu0
        %v468 = vadd.f32 %v317, %v467
        %v469 = vpop.f32.mrb[0].mxu0
        %470 = vdwg.mxu0
        %v471 = vmax.f32 %v417, 0.0
        %v472 = vmax.f32 %v420, 0.0
        %v473 = vmax.f32 %v425, 0.0
        %v474 = vmax.f32 %v428, 0.0
        %v475 = vmax.f32 %v433, 0.0
        %v476 = vmax.f32 %v436, 0.0
        %v477 = vmax.f32 %v441, 0.0
        %v478 = vmax.f32 %v444, 0.0
        %v479 = vmax.f32 %v449, 0.0
        %v480 = vmax.f32 %v452, 0.0
        %v481 = vmax.f32 %v457, 0.0
        %v482 = vmax.f32 %v460, 0.0
        %v483 = vmax.f32 %v465, 0.0
        %v484 = vmax.f32 %v468, 0.0
        %v485 = vpack.c.bf16 %v472, %v471
        %v486 = vpack.c.bf16 %v474, %v473
        %v487 = vpack.c.bf16 %v476, %v475
        %v488 = vpack.c.bf16 %v478, %v477
        %v489 = vpack.c.bf16 %v480, %v479
        %v490 = vpack.c.bf16 %v482, %v481
        %v491 = vpack.c.bf16 %v484, %v483
        %v492 = vld [vmem:[%s3] sm:$0xf]
        %v493 = vld [vmem:[%s3 + $0x4] sm:$0xf]
        %v494 = vld [vmem:[%s3 + $0x8] sm:$0xf]
        %v495 = vld [vmem:[%s3 + $0xc] sm:$0xf]
        %v496 = vld [vmem:[%s3 + $0x10] sm:$0xf]
        %v497 = vld [vmem:[%s3 + $0x14] sm:$0xf]
        %v498 = vld [vmem:[%s3 + $0x18] sm:$0xf]
        %v499 = vld [vmem:[%s3 + $0x1c] sm:$0xf]
        %v500 = vld [vmem:[%s3 + $0x20] sm:$0xf]
        %v501 = vld [vmem:[%s3 + $0x24] sm:$0xf]
        %v502 = vld [vmem:[%s3 + $0x28] sm:$0xf]
        %v503 = vld [vmem:[%s3 + $0x2c] sm:$0xf]
        %v504 = vld [vmem:[%s3 + $0x30] sm:$0xf]
        %v505 = vld [vmem:[%s3 + $0x34] sm:$0xf]
        %v506 = vld [vmem:[%s3 + $0x38] sm:$0xf]
        %v507 = vld [vmem:[%s3 + $0x3c] sm:$0xf]
        %v508 = vld [vmem:[%s4] sm:$0x1]
        %v510 = vlaneseq
        %v511 = vshrl.u32 %v510, 7
        %v512 = vsub.s32 0, %v511
        %v513 = vrot.slane %v508, %v512
        %v531 = vunpack.c.l.b16 %v492
        %v532 = vunpack.c.l.b16 %v493
        %v533 = vunpack.c.l.b16 %v494
        %v534 = vunpack.c.l.b16 %v495
        %v535 = vunpack.c.l.b16 %v496
        %v536 = vunpack.c.l.b16 %v497
        %v537 = vunpack.c.l.b16 %v498
        %v538 = vunpack.c.l.b16 %v499
        %v539 = vunpack.c.l.b16 %v500
        %v540 = vunpack.c.l.b16 %v501
        %v541 = vunpack.c.l.b16 %v502
        %v542 = vunpack.c.l.b16 %v503
        %v543 = vunpack.c.l.b16 %v504
        %v544 = vunpack.c.l.b16 %v505
        %v545 = vunpack.c.l.b16 %v506
        %v546 = vunpack.c.l.b16 %v507
        %v547 = vpack.c.b16 %v532, %v531
        %v548 = vpack.c.b16 %v534, %v533
        %v549 = vpack.c.b16 %v536, %v535
        %v550 = vpack.c.b16 %v538, %v537
        %v551 = vpack.c.b16 %v540, %v539
        %v552 = vpack.c.b16 %v542, %v541
        %v553 = vpack.c.b16 %v544, %v543
        %v554 = vpack.c.b16 %v546, %v545
        %563 = vmatprep.subr.bf16.mxu0 0
        %564 = vmatpush1.bf16.msra.mxu0 %v547
        %565 = vmatprep.subr.bf16.mxu0 0
        %566 = vmatpush1.bf16.msra.mxu0 %v548
        %567 = vmatprep.subr.bf16.mxu0 0
        %568 = vmatpush1.bf16.msra.mxu0 %v549
        %569 = vmatprep.subr.bf16.mxu0 0
        %570 = vmatpush1.bf16.msra.mxu0 %v550
        %571 = vmatprep.subr.bf16.mxu0 0
        %572 = vmatpush1.bf16.msra.mxu0 %v551
        %573 = vmatprep.subr.bf16.mxu0 0
        %574 = vmatpush1.bf16.msra.mxu0 %v552
        %575 = vmatprep.subr.bf16.mxu0 0
        %576 = vmatpush1.bf16.msra.mxu0 %v553
        %577 = vmatprep.subr.bf16.mxu0 0
        %578 = vmatpush1.bf16.msra.mxu0 %v554
        %579 = vmatprep.subr.bf16.mxu0 0
        %580 = vmatpush1.bf16.msra.mxu0 0
        %581 = vmatprep.subr.bf16.mxu0 0
        %582 = vmatpush1.bf16.msra.mxu0 0
        %583 = vmatprep.subr.bf16.mxu0 0
        %584 = vmatpush1.bf16.msra.mxu0 0
        %585 = vmatprep.subr.bf16.mxu0 0
        %586 = vmatpush1.bf16.msra.mxu0 0
        %587 = vmatprep.subr.bf16.mxu0 0
        %588 = vmatpush1.bf16.msra.mxu0 0
        %589 = vmatprep.subr.bf16.mxu0 0
        %590 = vmatpush1.bf16.msra.mxu0 0
        %591 = vmatprep.subr.bf16.mxu0 0
        %592 = vmatpush1.bf16.msra.mxu0 0
        %593 = vmatprep.subr.bf16.mxu0 0
        %594 = vmatpush1.bf16.msra.mxu0 0
        %595 = vmatprep.mubr.bf16.mxu0 0
        %596 = vmatmul.mubr.bf16.gmra.mrb[0].mxu0 %v485
        %v597 = vpop.f32.mrb[0].mxu0
        %v598 = vadd.f32 %v513, %v597
        %v599 = vpop.f32.mrb[0].mxu0
        %v600 = vpop.f32.mrb[0].mxu0
        %v601 = vadd.f32 %v513, %v600
        %v602 = vpop.f32.mrb[0].mxu0
        %603 = vmatprep.mubr.bf16.mxu0 0
        %604 = vmatmul.mubr.bf16.gmra.mrb[0].mxu0 %v486
        %v605 = vpop.f32.mrb[0].mxu0
        %v606 = vadd.f32 %v513, %v605
        %v607 = vpop.f32.mrb[0].mxu0
        %v608 = vpop.f32.mrb[0].mxu0
        %v609 = vadd.f32 %v513, %v608
        %v610 = vpop.f32.mrb[0].mxu0
        %611 = vmatprep.mubr.bf16.mxu0 0
        %612 = vmatmul.mubr.bf16.gmra.mrb[0].mxu0 %v487
        %v613 = vpop.f32.mrb[0].mxu0
        %v614 = vadd.f32 %v513, %v613
        %v615 = vpop.f32.mrb[0].mxu0
        %v616 = vpop.f32.mrb[0].mxu0
        %v617 = vadd.f32 %v513, %v616
        %v618 = vpop.f32.mrb[0].mxu0
        %619 = vmatprep.mubr.bf16.mxu0 0
        %620 = vmatmul.mubr.bf16.gmra.mrb[0].mxu0 %v488
        %v621 = vpop.f32.mrb[0].mxu0
        %v622 = vadd.f32 %v513, %v621
        %v623 = vpop.f32.mrb[0].mxu0
        %v624 = vpop.f32.mrb[0].mxu0
        %v625 = vadd.f32 %v513, %v624
        %v626 = vpop.f32.mrb[0].mxu0
        %627 = vmatprep.mubr.bf16.mxu0 0
        %628 = vmatmul.mubr.bf16.gmra.mrb[0].mxu0 %v489
        %v629 = vpop.f32.mrb[0].mxu0
        %v630 = vadd.f32 %v513, %v629
        %v631 = vpop.f32.mrb[0].mxu0
        %v632 = vpop.f32.mrb[0].mxu0
        %v633 = vadd.f32 %v513, %v632
        %v634 = vpop.f32.mrb[0].mxu0
        %635 = vmatprep.mubr.bf16.mxu0 0
        %636 = vmatmul.mubr.bf16.gmra.mrb[0].mxu0 %v490
        %v637 = vpop.f32.mrb[0].mxu0
        %v638 = vadd.f32 %v513, %v637
        %v639 = vpop.f32.mrb[0].mxu0
        %v640 = vpop.f32.mrb[0].mxu0
        %v641 = vadd.f32 %v513, %v640
        %v642 = vpop.f32.mrb[0].mxu0
        %643 = vmatprep.mubr.bf16.mxu0 0
        %644 = vmatmul.mubr.bf16.gmra.mrb[0].mxu0 %v491
        %v645 = vpop.f32.mrb[0].mxu0
        %v646 = vadd.f32 %v513, %v645
        %v647 = vpop.f32.mrb[0].mxu0
        %v648 = vpop.f32.mrb[0].mxu0
        %v649 = vadd.f32 %v513, %v648
        %v650 = vpop.f32.mrb[0].mxu0
        %651 = vdwg.mxu0
        %v652 = vmax.f32 %v598, 0.0
        %v653 = vmax.f32 %v601, 0.0
        %v654 = vmax.f32 %v606, 0.0
        %v655 = vmax.f32 %v609, 0.0
        %v656 = vmax.f32 %v614, 0.0
        %v657 = vmax.f32 %v617, 0.0
        %v658 = vmax.f32 %v622, 0.0
        %v659 = vmax.f32 %v625, 0.0
        %v660 = vmax.f32 %v630, 0.0
        %v661 = vmax.f32 %v633, 0.0
        %v662 = vmax.f32 %v638, 0.0
        %v663 = vmax.f32 %v641, 0.0
        %v664 = vmax.f32 %v646, 0.0
        %v665 = vmax.f32 %v649, 0.0
        %v666 = vpack.c.bf16 %v653, %v652
        %v667 = vpack.c.bf16 %v655, %v654
        %v668 = vpack.c.bf16 %v657, %v656
        %v669 = vpack.c.bf16 %v659, %v658
        %v670 = vpack.c.bf16 %v661, %v660
        %v671 = vpack.c.bf16 %v663, %v662
        %v672 = vpack.c.bf16 %v665, %v664
        %v673 = vld [vmem:[%s5] sm:$0xf]
        %v674 = vld [vmem:[%s5 + $0x4] sm:$0xf]
        %v675 = vld [vmem:[%s5 + $0x8] sm:$0xf]
        %v676 = vld [vmem:[%s5 + $0xc] sm:$0xf]
        %v677 = vld [vmem:[%s5 + $0x10] sm:$0xf]
        %v678 = vld [vmem:[%s5 + $0x14] sm:$0xf]
        %v679 = vld [vmem:[%s5 + $0x18] sm:$0xf]
        %v680 = vld [vmem:[%s5 + $0x1c] sm:$0xf]
        %v681 = vld [vmem:[%s5 + $0x20] sm:$0xf]
        %v682 = vld [vmem:[%s5 + $0x24] sm:$0xf]
        %v683 = vld [vmem:[%s5 + $0x28] sm:$0xf]
        %v684 = vld [vmem:[%s5 + $0x2c] sm:$0xf]
        %v685 = vld [vmem:[%s5 + $0x30] sm:$0xf]
        %v686 = vld [vmem:[%s5 + $0x34] sm:$0xf]
        %v687 = vld [vmem:[%s5 + $0x38] sm:$0xf]
        %v688 = vld [vmem:[%s5 + $0x3c] sm:$0xf]
        %v689 = vld [vmem:[%s6] sm:$0x1]
        %v691 = vlaneseq
        %v692 = vshrl.u32 %v691, 7
        %v693 = vsub.s32 0, %v692
        %v694 = vrot.slane %v689, %v693
        %v712 = vunpack.c.l.b16 %v673
        %v713 = vunpack.c.l.b16 %v674
        %v714 = vunpack.c.l.b16 %v675
        %v715 = vunpack.c.l.b16 %v676
        %v716 = vunpack.c.l.b16 %v677
        %v717 = vunpack.c.l.b16 %v678
        %v718 = vunpack.c.l.b16 %v679
        %v719 = vunpack.c.l.b16 %v680
        %v720 = vunpack.c.l.b16 %v681
        %v721 = vunpack.c.l.b16 %v682
        %v722 = vunpack.c.l.b16 %v683
        %v723 = vunpack.c.l.b16 %v684
        %v724 = vunpack.c.l.b16 %v685
        %v725 = vunpack.c.l.b16 %v686
        %v726 = vunpack.c.l.b16 %v687
        %v727 = vunpack.c.l.b16 %v688
        %v728 = vpack.c.b16 %v713, %v712
        %v729 = vpack.c.b16 %v715, %v714
        %v730 = vpack.c.b16 %v717, %v716
        %v731 = vpack.c.b16 %v719, %v718
        %v732 = vpack.c.b16 %v721, %v720
        %v733 = vpack.c.b16 %v723, %v722
        %v734 = vpack.c.b16 %v725, %v724
        %v735 = vpack.c.b16 %v727, %v726
        %744 = vmatprep.subr.bf16.mxu0 0
        %745 = vmatpush1.bf16.msra.mxu0 %v728
        %746 = vmatprep.subr.bf16.mxu0 0
        %747 = vmatpush1.bf16.msra.mxu0 %v729
        %748 = vmatprep.subr.bf16.mxu0 0
        %749 = vmatpush1.bf16.msra.mxu0 %v730
        %750 = vmatprep.subr.bf16.mxu0 0
        %751 = vmatpush1.bf16.msra.mxu0 %v731
        %752 = vmatprep.subr.bf16.mxu0 0
        %753 = vmatpush1.bf16.msra.mxu0 %v732
        %754 = vmatprep.subr.bf16.mxu0 0
        %755 = vmatpush1.bf16.msra.mxu0 %v733
        %756 = vmatprep.subr.bf16.mxu0 0
        %757 = vmatpush1.bf16.msra.mxu0 %v734
        %758 = vmatprep.subr.bf16.mxu0 0
        %759 = vmatpush1.bf16.msra.mxu0 %v735
        %760 = vmatprep.subr.bf16.mxu0 0
        %761 = vmatpush1.bf16.msra.mxu0 0
        %762 = vmatprep.subr.bf16.mxu0 0
        %763 = vmatpush1.bf16.msra.mxu0 0
        %764 = vmatprep.subr.bf16.mxu0 0
        %765 = vmatpush1.bf16.msra.mxu0 0
        %766 = vmatprep.subr.bf16.mxu0 0
        %767 = vmatpush1.bf16.msra.mxu0 0
        %768 = vmatprep.subr.bf16.mxu0 0
        %769 = vmatpush1.bf16.msra.mxu0 0
        %770 = vmatprep.subr.bf16.mxu0 0
        %771 = vmatpush1.bf16.msra.mxu0 0
        %772 = vmatprep.subr.bf16.mxu0 0
        %773 = vmatpush1.bf16.msra.mxu0 0
        %774 = vmatprep.subr.bf16.mxu0 0
        %775 = vmatpush1.bf16.msra.mxu0 0
        %776 = vmatprep.mubr.bf16.mxu0 0
        %777 = vmatmul.mubr.bf16.gmra.mrb[0].mxu0 %v666
        %v778 = vpop.f32.mrb[0].mxu0
        %v779 = vadd.f32 %v694, %v778
        %v780 = vpop.f32.mrb[0].mxu0
        %v781 = vpop.f32.mrb[0].mxu0
        %v782 = vadd.f32 %v694, %v781
        %v783 = vpop.f32.mrb[0].mxu0
        %784 = vmatprep.mubr.bf16.mxu0 0
        %785 = vmatmul.mubr.bf16.gmra.mrb[0].mxu0 %v667
        %v786 = vpop.f32.mrb[0].mxu0
        %v787 = vadd.f32 %v694, %v786
        %v788 = vpop.f32.mrb[0].mxu0
        %v789 = vpop.f32.mrb[0].mxu0
        %v790 = vadd.f32 %v694, %v789
        %v791 = vpop.f32.mrb[0].mxu0
        %792 = vmatprep.mubr.bf16.mxu0 0
        %793 = vmatmul.mubr.bf16.gmra.mrb[0].mxu0 %v668
        %v794 = vpop.f32.mrb[0].mxu0
        %v795 = vadd.f32 %v694, %v794
        %v796 = vpop.f32.mrb[0].mxu0
        %v797 = vpop.f32.mrb[0].mxu0
        %v798 = vadd.f32 %v694, %v797
        %v799 = vpop.f32.mrb[0].mxu0
        %800 = vmatprep.mubr.bf16.mxu0 0
        %801 = vmatmul.mubr.bf16.gmra.mrb[0].mxu0 %v669
        %v802 = vpop.f32.mrb[0].mxu0
        %v803 = vadd.f32 %v694, %v802
        %v804 = vpop.f32.mrb[0].mxu0
        %v805 = vpop.f32.mrb[0].mxu0
        %v806 = vadd.f32 %v694, %v805
        %v807 = vpop.f32.mrb[0].mxu0
        %808 = vmatprep.mubr.bf16.mxu0 0
        %809 = vmatmul.mubr.bf16.gmra.mrb[0].mxu0 %v670
        %v810 = vpop.f32.mrb[0].mxu0
        %v811 = vadd.f32 %v694, %v810
        %v812 = vpop.f32.mrb[0].mxu0
        %v813 = vpop.f32.mrb[0].mxu0
        %v814 = vadd.f32 %v694, %v813
        %v815 = vpop.f32.mrb[0].mxu0
        %816 = vmatprep.mubr.bf16.mxu0 0
        %817 = vmatmul.mubr.bf16.gmra.mrb[0].mxu0 %v671
        %v818 = vpop.f32.mrb[0].mxu0
        %v819 = vadd.f32 %v694, %v818
        %v820 = vpop.f32.mrb[0].mxu0
        %v821 = vpop.f32.mrb[0].mxu0
        %v822 = vadd.f32 %v694, %v821
        %v823 = vpop.f32.mrb[0].mxu0
        %824 = vmatprep.mubr.bf16.mxu0 0
        %825 = vmatmul.mubr.bf16.gmra.mrb[0].mxu0 %v672
        %v826 = vpop.f32.mrb[0].mxu0
        %v827 = vadd.f32 %v694, %v826
        %v828 = vpop.f32.mrb[0].mxu0
        %v829 = vpop.f32.mrb[0].mxu0
        %v830 = vadd.f32 %v694, %v829
        %v831 = vpop.f32.mrb[0].mxu0
        %832 = vdwg.mxu0
        %v833 = vpack.c.bf16 %v782, %v779
        %v834 = vpack.c.bf16 %v790, %v787
        %v835 = vpack.c.bf16 %v798, %v795
        %v836 = vpack.c.bf16 %v806, %v803
        %v837 = vpack.c.bf16 %v814, %v811
        %v838 = vpack.c.bf16 %v822, %v819
        %v839 = vpack.c.bf16 %v830, %v827
        %v847 = vunpack.c.l.b16 %v833
        %v848 = vunpack.c.h.b16 %v833
        %v849 = vunpack.c.l.b16 %v834
        %v850 = vunpack.c.h.b16 %v834
        %v851 = vunpack.c.l.b16 %v835
        %v852 = vunpack.c.h.b16 %v835
        %v853 = vunpack.c.l.b16 %v836
        %v854 = vunpack.c.h.b16 %v836
        %v855 = vunpack.c.l.b16 %v837
        %v856 = vunpack.c.h.b16 %v837
        %v857 = vunpack.c.l.b16 %v838
        %v858 = vunpack.c.h.b16 %v838
        %v859 = vunpack.c.l.b16 %v839
        %v860 = vunpack.c.h.b16 %v839
        %v861 = vpack.c.b16 %v847, %v847
        %v862 = vpack.c.b16 %v848, %v848
        %v863 = vpack.c.b16 %v849, %v849
        %v864 = vpack.c.b16 %v850, %v850
        %v865 = vpack.c.b16 %v851, %v851
        %v866 = vpack.c.b16 %v852, %v852
        %v867 = vpack.c.b16 %v853, %v853
        %v868 = vpack.c.b16 %v854, %v854
        %v869 = vpack.c.b16 %v855, %v855
        %v870 = vpack.c.b16 %v856, %v856
        %v871 = vpack.c.b16 %v857, %v857
        %v872 = vpack.c.b16 %v858, %v858
        %v873 = vpack.c.b16 %v859, %v859
        %v874 = vpack.c.b16 %v860, %v860
        %889 = vst [vmem:[%s287] sm:$0xf] %v861
        %890 = vst [vmem:[%s287 + $0x4] sm:$0xf] %v862
        %891 = vst [vmem:[%s287 + $0x8] sm:$0xf] %v863
        %892 = vst [vmem:[%s287 + $0xc] sm:$0xf] %v864
        %893 = vst [vmem:[%s287 + $0x10] sm:$0xf] %v865
        %894 = vst [vmem:[%s287 + $0x14] sm:$0xf] %v866
        %895 = vst [vmem:[%s287 + $0x18] sm:$0xf] %v867
        %896 = vst [vmem:[%s287 + $0x1c] sm:$0xf] %v868
        %897 = vst [vmem:[%s287 + $0x20] sm:$0xf] %v869
        %898 = vst [vmem:[%s287 + $0x24] sm:$0xf] %v870
        %899 = vst [vmem:[%s287 + $0x28] sm:$0xf] %v871
        %900 = vst [vmem:[%s287 + $0x2c] sm:$0xf] %v872
        %901 = vst [vmem:[%s287 + $0x30] sm:$0xf] %v873
        %902 = vst [vmem:[%s287 + $0x34] sm:$0xf] %v874
        %s903 = sand.u32 %s182, 1
        %s904 = scalar_lea.sflag [#allocation4], %s903
        %s905 = sand.u32 %s182, 1
        %s906 = smul.addr %s905, 56
        %s907 = scalar_lea.vmem [#allocation5], %s906
        // Predicated region
        $region53: #{tpu_custom_call.1} parent=47 // pred_check
          %p908 = pneg %p192
        $region54: #{tpu_custom_call.1} parent=47 // pred_check_branch
          %910 = sbr.rel (%p908) target = $region56
        $region55: #{tpu_custom_call.1} parent=47 // pred_region
          %s911 = smul.u32 14, %s22
          %s913 = ssub.s32 896, 896
          %914 = vsyncadd %s904, %s913
          %s915 = smul.addr %s911, 64
          %s916 = scalar_lea.hbm %s7, %s915
          %s917 = sshll.u32 %s907, 4
          %s918 = int_to_ptr.vmem [resolvable:$true] %s917
          %923 = dma.vmem_to_hbm [thread:$0]  %s918, 896, %s916, %s904, 64, 64, 4
        $region56: #{tpu_custom_call.1} parent=47 // pred_fallthru
          _
      $region48: #{tpu_custom_call.1} parent=5 // pred_fallthru
        _
      %p924 = scmp.le.s32.totalorder 2, %s17
      // Predicated region
      $region57: #{tpu_custom_call.1} parent=5 // pred_check
        %p925 = pneg %p924
      $region58: #{tpu_custom_call.1} parent=5 // pred_check_branch
        %927 = sbr.rel (%p925) target = $region60
      $region59: #{tpu_custom_call.1} parent=5 // pred_region
        %s928 = ssub.s32 %s17, 2
        // Predicated region
        $region61: #{tpu_custom_call.1} parent=59 // pred_check
          %p929 = pneg %p198
        $region62: #{tpu_custom_call.1} parent=59 // pred_check_branch
          %931 = sbr.rel (%p929) target = $region64
        $region63: #{tpu_custom_call.1} parent=59 // pred_region
          %s932 = sand.u32 %s183, 1
          %s933 = scalar_lea.sflag [#allocation4], %s932
          %s934 = sand.u32 %s183, 1
          %s935 = smul.addr %s934, 56
          %s936 = scalar_lea.vmem [#allocation5], %s935
          %937 = dma.done %s933, 896
        $region64: #{tpu_custom_call.1} parent=59 // pred_fallthru
          _
      $region60: #{tpu_custom_call.1} parent=5 // pred_fallthru
        _
    $region6: #{tpu_custom_call.1} parent=1 // loop_footer
      %s21 = sadd.s32 1, %s17
    $region7: #{tpu_custom_call.1} parent=1 // loop_footer_branch
      %16 = sbr.rel target = $region3
    $region8: #{tpu_custom_call.1} parent=1 // loop_exit
      _
    %938 = vsyncpa [#allocation3], 1
    %s939 = scalar_lea.sflag [#allocation3], 1
    %940 = vsyncpa %s939, 1
    %941 = vsyncpa [#allocation4], 1
    %s942 = scalar_lea.sflag [#allocation4], 1
    %943 = vsyncpa %s942, 1

</llo_original>
